<compile_context>
chip_gen: v7x
topology: tpu7x:2x2x1
jax: 0.10.0
libtpu: 0.0.40
codegen_flags: <defaults>
</compile_context>

<pallas_src>
import functools

import jax
import jax.numpy as jnp
from jax.experimental import pallas as pl
from jax.experimental.pallas import tpu as pltpu


def _l1_depth_loss_kernel(pred_ref, label_ref, len_ref,      # inputs (VMEM tiles)
                          loss_ref,                           # output (1,1,1) per shard
                          row_sum_ref, loss_acc_ref,          # VMEM scratch (TB,1)
                          *, batch_size, seq_len,
                          block_rows, block_cols, mask_cols):
    c = pl.program_id(0)        # shard (parallel; one per TensorCore on v7x)
    j = pl.program_id(1)        # batch-row tile within the shard
    s = pl.program_id(2)        # seq tile (innermost reduction)
    nb = pl.num_programs(1)
    ns = pl.num_programs(2)

    @pl.when(jnp.logical_and(j == 0, s == 0))
    def _init_shard():
        loss_acc_ref[...] = jnp.zeros_like(loss_acc_ref)

    @pl.when(s == 0)
    def _init_rows():
        row_sum_ref[...] = jnp.zeros_like(row_sum_ref)

    # Upcast inside the kernel (inputs may be bf16 to halve HBM traffic).
    pred = pred_ref[...].astype(jnp.float32)          # (TB, TC)
    labels = label_ref[...].astype(jnp.float32)       # (TB, TC)

    # Fused masking via a single select: |p - l| where label != -1
    # (== |p*m - l*m| for a 0/1 mask).
    valid = labels != -1.0
    if mask_cols:
        # Last seq tile may extend past S; mask the padded columns.
        col_ids = s * block_cols + jax.lax.broadcasted_iota(
            jnp.int32, (block_rows, block_cols), 1)
        valid = jnp.logical_and(valid, col_ids < seq_len)
    abs_err = jnp.where(valid, jnp.abs(pred - labels), 0.0)

    # Per-row partial L1 over this seq tile (wide accumulator, no scalar RMW).
    row_sum_ref[...] += jnp.sum(abs_err, axis=1, keepdims=True)   # (TB, 1)

    @pl.when(s == ns - 1)
    def _end_of_row_tile():
        lengths_f = len_ref[...].astype(jnp.float32)              # (TB, 1)
        first_row = (c * nb + j) * block_rows
        row_ids = first_row + jax.lax.broadcasted_iota(
            jnp.int32, (block_rows, 1), 0)
        row_ok = row_ids < batch_size
        # length == 0 rows keep their inf/nan exactly as in PyTorch; padded /
        # duplicated rows are dropped via select (select does not propagate
        # NaN from the unselected branch -- keep this a select, not a multiply).
        normalized = jnp.where(row_ok, row_sum_ref[...] / lengths_f, 0.0)
        loss_acc_ref[...] += normalized                           # (TB, 1)

    @pl.when(jnp.logical_and(j == nb - 1, s == ns - 1))
    def _finalize_shard():
        # Single cross-sublane reduction per shard, only at finalize.
        total = jnp.sum(loss_acc_ref[...], axis=0, keepdims=True)   # (1, 1)
        loss_ref[...] = total.reshape(loss_ref.shape)


def _sublane_multiple(itemsize):
    # Sub-32-bit dtypes pack along sublanes: 8 for f32, 16 for bf16, 32 for int8.
    return max(8, 32 // max(1, int(itemsize)))


def _choose_tiles(batch, seq, itemsize, target_tile_bytes=2 << 20):
    """Pick (block_rows, block_cols): ~2 MiB per input tile, VMEM-safe everywhere."""
    sub = _sublane_multiple(itemsize)
    # Column tile: prefer full S; otherwise a lane-aligned cap that still leaves
    # room for at least `sub` rows inside the per-input byte target (bounds the
    # double-buffered footprint for very long sequences, esp. on v7x).
    max_cols = max(128, ((target_tile_bytes // (sub * itemsize)) // 128) * 128)
    block_cols = seq if seq <= max_cols else int(max_cols)
    # Row tile: fill the byte target with block_cols columns.
    rows = target_tile_bytes // max(1, block_cols * itemsize)
    rows = max(sub, (int(rows) // sub) * sub)
    rows = min(rows, 4096)
    if batch <= rows:
        rows = batch                      # full-dim block is always layout-legal
    return int(rows), int(block_cols)


def l1_depth_loss(predictions, label_batch, length_batch, *,
                  block_rows=None, block_cols=None, num_shards=2):
    """Pallas implementation of L1DepthLoss.forward -> (batch_loss, total_sents)."""
    B, S = predictions.shape
    lengths2d = length_batch.reshape(B, 1).astype(jnp.int32)

    pred_item = jnp.dtype(predictions.dtype).itemsize
    lab_item = jnp.dtype(label_batch.dtype).itemsize
    if block_rows is None or block_cols is None:
        auto_rows, auto_cols = _choose_tiles(B, S, max(pred_item, lab_item))
        if block_rows is None:
            block_rows = auto_rows
        if block_cols is None:
            block_cols = auto_cols
    block_rows = int(block_rows)
    block_cols = int(block_cols)

    # Shard the batch stream across TensorCores (2x HBM paths on v7x; no-op on
    # v5e/v6e). Uneven splits reuse (clamped) the last real row-block; its
    # duplicate logical rows are masked out inside the kernel.
    total_row_blocks = int(pl.cdiv(B, block_rows))
    num_shards = max(1, min(int(num_shards), total_row_blocks))
    nb = int(pl.cdiv(total_row_blocks, num_shards))
    ns = int(pl.cdiv(S, block_cols))
    last_block = total_row_blocks - 1

    def row_block(c, j):
        return jnp.minimum(c * nb + j, last_block)

    kernel = functools.partial(
        _l1_depth_loss_kernel,
        batch_size=B, seq_len=S,
        block_rows=block_rows, block_cols=block_cols,
        mask_cols=(S % block_cols) != 0)

    # Explicit VMEM budget: 2 inputs x 2 pipeline buffers x tile (+ lengths,
    # scratch, slack). ~2 MiB tiles -> ~9 MiB footprint, safely under the
    # scoped-VMEM defaults on v5e (16 MiB) / v6e / v7x (32 MiB).
    tile_bytes = block_rows * block_cols * (pred_item + lab_item)
    footprint = 2 * (tile_bytes + block_rows * 4) + 2 * block_rows * 4 + (1 << 16)
    vmem_limit = int(min(32 << 20, max(8 << 20, 2 * footprint)))

    # Mem-bound streaming kernel: let XLA overlap it correctly with neighbors.
    cost = pl.CostEstimate(
        flops=4 * B * S,
        transcendentals=0,
        bytes_accessed=B * S * (pred_item + lab_item) + B * 4 + num_shards * 4)

    loss_partial = pl.pallas_call(
        kernel,
        out_shape=jax.ShapeDtypeStruct((num_shards, 1, 1), jnp.float32),
        grid_spec=pltpu.PrefetchScalarGridSpec(
            num_scalar_prefetch=0,
            grid=(num_shards, nb, ns),
            in_specs=[
                pl.BlockSpec((block_rows, block_cols),
                             lambda c, j, s: (row_block(c, j), s)),   # predictions
                pl.BlockSpec((block_rows, block_cols),
                             lambda c, j, s: (row_block(c, j), s)),   # labels
                pl.BlockSpec((block_rows, 1),
                             lambda c, j, s: (row_block(c, j), 0)),   # lengths
            ],
            out_specs=pl.BlockSpec((1, 1, 1), lambda c, j, s: (c, 0, 0)),
            scratch_shapes=[pltpu.VMEM((block_rows, 1), jnp.float32),   # row |err| sums
                            pltpu.VMEM((block_rows, 1), jnp.float32)],  # running norm. loss
        ),
        compiler_params=pltpu.CompilerParams(
            dimension_semantics=("parallel", "arbitrary", "arbitrary"),
            vmem_limit_bytes=vmem_limit),
        cost_estimate=cost,
    )(predictions, label_batch, lengths2d)

    # Combine per-shard partials + trivial O(B) count in plain JAX.
    total_loss = jnp.sum(loss_partial)
    total_sents = jnp.sum(length_batch != 0).astype(jnp.float32)
    batch_loss = jnp.where(total_sents > 0,
                           total_loss / total_sents,
                           jnp.zeros_like(total_loss))
    return batch_loss, total_sents


def l1_depth_loss_ref(predictions, label_batch, length_batch):
    """Pure-JAX reference mirroring the PyTorch forward pass (f32 math)."""
    predictions = predictions.astype(jnp.float32)
    label_batch = label_batch.astype(jnp.float32)
    total_sents = jnp.sum(length_batch != 0).astype(jnp.float32)
    labels_1s = (label_batch != -1).astype(jnp.float32)
    pm = predictions * labels_1s
    lm = label_batch * labels_1s
    loss_per_sent = jnp.sum(jnp.abs(pm - lm), axis=1)
    normalized = loss_per_sent / length_batch.astype(jnp.float32)
    batch_loss = jnp.where(total_sents > 0,
                           jnp.sum(normalized) / total_sents,
                           jnp.float32(0.0))
    return batch_loss, total_sents


if __name__ == "__main__":
    # Small shapes consistent with the module: batch=20 sentences, seq=200 words.
    # B deliberately NOT a tile multiple and S NOT a multiple of 128 so the
    # row / column masks and the clamped duplicate shard-block are exercised.
    B, S = 20, 200
    key = jax.random.PRNGKey(0)
    k_pred, k_lab, k_mask, k_len = jax.random.split(key, 4)

    predictions = jax.random.normal(k_pred, (B, S), dtype=jnp.float32)
    label_vals = jax.random.uniform(k_lab, (B, S), dtype=jnp.float32,
                                    minval=0.0, maxval=10.0)
    # ~30% of the words are padding, marked with label == -1
    pad_mask = jax.random.bernoulli(k_mask, p=0.3, shape=(B, S))
    label_batch = jnp.where(pad_mask, jnp.float32(-1.0), label_vals)
    # All sentences non-empty (lengths in [1, S]) so the result stays finite,
    # matching the PyTorch semantics of dividing by length_batch.float().
    length_batch = jax.random.randint(k_len, (B,), minval=1, maxval=S + 1,
                                      dtype=jnp.int32)

    ref_loss, ref_sents = l1_depth_loss_ref(predictions, label_batch, length_batch)

    # 1) Auto tile size (single full-array block, 1 shard for this tiny batch).
    loss, sents = l1_depth_loss(predictions, label_batch, length_batch)
    loss = jax.block_until_ready(loss)
    sents = jax.block_until_ready(sents)
    assert jnp.allclose(loss, ref_loss, rtol=1e-4, atol=1e-4), (loss, ref_loss)
    assert jnp.allclose(sents, ref_sents), (sents, ref_sents)

    # 2) Forced small tiles -> grid (2 shards, 2 row tiles, 2 seq tiles):
    #    exercises pipelining, accumulator carry, S tiling + column mask,
    #    partial row tile and the clamped duplicate shard block.
    loss2, sents2 = l1_depth_loss(predictions, label_batch, length_batch,
                                  block_rows=8, block_cols=128)
    loss2 = jax.block_until_ready(loss2)
    sents2 = jax.block_until_ready(sents2)
    assert jnp.allclose(loss2, ref_loss, rtol=1e-4, atol=1e-4), (loss2, ref_loss)
    assert jnp.allclose(sents2, ref_sents), (sents2, ref_sents)

    # 3) bf16 inputs DMA'd as bf16, upcast inside the kernel (half HBM bytes),
    #    packing-aligned 16-row tiles.
    pred_bf = predictions.astype(jnp.bfloat16)
    lab_bf = label_batch.astype(jnp.bfloat16)
    ref3_loss, ref3_sents = l1_depth_loss_ref(pred_bf, lab_bf, length_batch)
    loss3, sents3 = l1_depth_loss(pred_bf, lab_bf, length_batch,
                                  block_rows=16, block_cols=128)
    loss3 = jax.block_until_ready(loss3)
    sents3 = jax.block_until_ready(sents3)
    assert jnp.allclose(loss3, ref3_loss, rtol=1e-4, atol=1e-4), (loss3, ref3_loss)
    assert jnp.allclose(sents3, ref3_sents), (sents3, ref3_sents)

    print("KERNEL_OK")
</pallas_src>

<mosaic_0001>
module attributes {stable_mosaic.version = 11 : i64} {
  func.func @_l1_depth_loss_kernel(%arg0: i32, %arg1: i32, %arg2: i32, %arg3: memref<20x200xf32, #tpu.memory_space<vmem>>, %arg4: memref<20x200xf32, #tpu.memory_space<vmem>>, %arg5: memref<20x1xi32, #tpu.memory_space<vmem>>, %arg6: memref<1x1x1xf32, #tpu.memory_space<vmem>>, %arg7: memref<20x1xf32, #tpu.memory_space<vmem>>, %arg8: memref<20x1xf32, #tpu.memory_space<vmem>>) attributes {dimension_semantics = [#tpu.dimension_semantics<parallel>, #tpu.dimension_semantics<arbitrary>, #tpu.dimension_semantics<arbitrary>], iteration_bounds = array<i64: 1, 1, 1>, scalar_prefetch = 0 : i64, scratch_operands = 2 : i64, tpu.core_type = #tpu.core_type<tc>, window_params = [{transform_indices = @transform_0, window_bounds = array<i64: 20, 200>}, {transform_indices = @transform_1, window_bounds = array<i64: 20, 200>}, {transform_indices = @transform_2, window_bounds = array<i64: 20, 1>}, {transform_indices = @transform_3, window_bounds = array<i64: 1, 1, 1>}]} {
    %c0_i32 = arith.constant 0 : i32
    %0 = arith.cmpi eq, %arg1, %c0_i32 : i32
    %c0_i32_0 = arith.constant 0 : i32
    %1 = arith.cmpi eq, %arg2, %c0_i32_0 : i32
    %2 = arith.andi %0, %1 : i1
    %3 = arith.extui %2 : i1 to i32
    %c0_i32_1 = arith.constant 0 : i32
    %4 = arith.cmpi ne, %3, %c0_i32_1 : i32
    scf.if %4 {
      %cst_18 = arith.constant 0.000000e+00 : f32
      %29 = vector.broadcast %cst_18 : f32 to vector<20x1xf32>
      %c0_19 = arith.constant 0 : index
      %c0_20 = arith.constant 0 : index
      %30 = vector.load %arg8[%c0_19, %c0_20] : memref<20x1xf32, #tpu.memory_space<vmem>>, vector<20x1xf32>
      tpu.vector_store %arg8[%c0_19, %c0_20], %29 {strides = array<i32>} : memref<20x1xf32, #tpu.memory_space<vmem>>, vector<20x1xf32>,
    } else {
    }
    %c0_i32_2 = arith.constant 0 : i32
    %5 = arith.cmpi eq, %arg2, %c0_i32_2 : i32
    %6 = arith.extui %5 : i1 to i32
    %c0_i32_3 = arith.constant 0 : i32
    %7 = arith.cmpi ne, %6, %c0_i32_3 : i32
    scf.if %7 {
      %cst_18 = arith.constant 0.000000e+00 : f32
      %29 = vector.broadcast %cst_18 : f32 to vector<20x1xf32>
      %c0_19 = arith.constant 0 : index
      %c0_20 = arith.constant 0 : index
      %30 = vector.load %arg7[%c0_19, %c0_20] : memref<20x1xf32, #tpu.memory_space<vmem>>, vector<20x1xf32>
      tpu.vector_store %arg7[%c0_19, %c0_20], %29 {strides = array<i32>} : memref<20x1xf32, #tpu.memory_space<vmem>>, vector<20x1xf32>,
    } else {
    }
    %c0 = arith.constant 0 : index
    %c0_4 = arith.constant 0 : index
    %8 = vector.load %arg3[%c0, %c0_4] : memref<20x200xf32, #tpu.memory_space<vmem>>, vector<20x200xf32>
    %c0_5 = arith.constant 0 : index
    %c0_6 = arith.constant 0 : index
    %9 = vector.load %arg4[%c0_5, %c0_6] : memref<20x200xf32, #tpu.memory_space<vmem>>, vector<20x200xf32>
    %cst = arith.constant -1.000000e+00 : f32
    %10 = vector.broadcast %cst : f32 to vector<20x200xf32>
    %11 = arith.cmpf one, %9, %10 : vector<20x200xf32>
    %12 = arith.subf %8, %9 : vector<20x200xf32>
    %13 = math.absf %12 : vector<20x200xf32>
    %cst_7 = arith.constant 0.000000e+00 : f32
    %14 = vector.broadcast %cst_7 : f32 to vector<20x200xf32>
    %15 = arith.select %11, %13, %14 : vector<20x200xi1>, vector<20x200xf32>
    %c0_8 = arith.constant 0 : index
    %c0_9 = arith.constant 0 : index
    %16 = vector.load %arg7[%c0_8, %c0_9] : memref<20x1xf32, #tpu.memory_space<vmem>>, vector<20x1xf32>
    %cst_10 = arith.constant dense<0.000000e+00> : vector<20xf32>
    %17 = vector.multi_reduction <add>, %15, %cst_10 [1] : vector<20x200xf32> to vector<20xf32>
    %18 = vector.shape_cast %17 : vector<20xf32> to vector<20x1xf32>
    %19 = arith.addf %16, %18 : vector<20x1xf32>
    %c0_11 = arith.constant 0 : index
    %c0_12 = arith.constant 0 : index
    %20 = vector.load %arg7[%c0_11, %c0_12] : memref<20x1xf32, #tpu.memory_space<vmem>>, vector<20x1xf32>
    tpu.vector_store %arg7[%c0_11, %c0_12], %19 {strides = array<i32>} : memref<20x1xf32, #tpu.memory_space<vmem>>, vector<20x1xf32>,
    %c0_i32_13 = arith.constant 0 : i32
    %21 = arith.cmpi eq, %arg2, %c0_i32_13 : i32
    %22 = arith.extui %21 : i1 to i32
    %c0_i32_14 = arith.constant 0 : i32
    %23 = arith.cmpi ne, %22, %c0_i32_14 : i32
    scf.if %23 {
      %c0_18 = arith.constant 0 : index
      %c0_19 = arith.constant 0 : index
      %29 = vector.load %arg5[%c0_18, %c0_19] : memref<20x1xi32, #tpu.memory_space<vmem>>, vector<20x1xi32>
      %30 = arith.sitofp %29 : vector<20x1xi32> to vector<20x1xf32>
      %c1_i32 = arith.constant 1 : i32
      %31 = arith.muli %arg0, %c1_i32 : i32
      %32 = arith.addi %31, %arg1 : i32
      %c20_i32 = arith.constant 20 : i32
      %33 = arith.muli %32, %c20_i32 : i32
      %34 = tpu.iota {dimensions = array<i32: 0>} : vector<20x1xi32>
      %35 = vector.broadcast %33 : i32 to vector<20x1xi32>
      %36 = arith.addi %35, %34 : vector<20x1xi32>
      %c20_i32_20 = arith.constant 20 : i32
      %37 = vector.broadcast %c20_i32_20 : i32 to vector<20x1xi32>
      %38 = arith.cmpi slt, %36, %37 : vector<20x1xi32>
      %c0_21 = arith.constant 0 : index
      %c0_22 = arith.constant 0 : index
      %39 = vector.load %arg7[%c0_21, %c0_22] : memref<20x1xf32, #tpu.memory_space<vmem>>, vector<20x1xf32>
      %40 = arith.divf %39, %30 : vector<20x1xf32>
      %cst_23 = arith.constant 0.000000e+00 : f32
      %41 = vector.broadcast %cst_23 : f32 to vector<20x1xf32>
      %42 = arith.select %38, %40, %41 : vector<20x1xi1>, vector<20x1xf32>
      %c0_24 = arith.constant 0 : index
      %c0_25 = arith.constant 0 : index
      %43 = vector.load %arg8[%c0_24, %c0_25] : memref<20x1xf32, #tpu.memory_space<vmem>>, vector<20x1xf32>
      %44 = arith.addf %43, %42 : vector<20x1xf32>
      %c0_26 = arith.constant 0 : index
      %c0_27 = arith.constant 0 : index
      %45 = vector.load %arg8[%c0_26, %c0_27] : memref<20x1xf32, #tpu.memory_space<vmem>>, vector<20x1xf32>
      tpu.vector_store %arg8[%c0_26, %c0_27], %44 {strides = array<i32>} : memref<20x1xf32, #tpu.memory_space<vmem>>, vector<20x1xf32>,
    } else {
    }
    %c0_i32_15 = arith.constant 0 : i32
    %24 = arith.cmpi eq, %arg1, %c0_i32_15 : i32
    %c0_i32_16 = arith.constant 0 : i32
    %25 = arith.cmpi eq, %arg2, %c0_i32_16 : i32
    %26 = arith.andi %24, %25 : i1
    %27 = arith.extui %26 : i1 to i32
    %c0_i32_17 = arith.constant 0 : i32
    %28 = arith.cmpi ne, %27, %c0_i32_17 : i32
    scf.if %28 {
      %c0_18 = arith.constant 0 : index
      %c0_19 = arith.constant 0 : index
      %29 = vector.load %arg8[%c0_18, %c0_19] : memref<20x1xf32, #tpu.memory_space<vmem>>, vector<20x1xf32>
      %cst_20 = arith.constant dense<0.000000e+00> : vector<1xf32>
      %30 = vector.multi_reduction <add>, %29, %cst_20 [0] : vector<20x1xf32> to vector<1xf32>
      %31 = vector.shape_cast %30 : vector<1xf32> to vector<1x1xf32>
      %32 = vector.shape_cast %31 : vector<1x1xf32> to vector<1x1x1xf32>
      %c0_21 = arith.constant 0 : index
      %c0_22 = arith.constant 0 : index
      %c0_23 = arith.constant 0 : index
      %33 = vector.load %arg6[%c0_21, %c0_22, %c0_23] : memref<1x1x1xf32, #tpu.memory_space<vmem>>, vector<1x1x1xf32>
      tpu.vector_store %arg6[%c0_21, %c0_22, %c0_23], %32 {strides = array<i32>} : memref<1x1x1xf32, #tpu.memory_space<vmem>>, vector<1x1x1xf32>,
    } else {
    }
    return
  }
  func.func @transform_0(%arg0: i32, %arg1: i32, %arg2: i32) -> (i32, i32) {
    %c1_i32 = arith.constant 1 : i32
    %0 = arith.muli %arg0, %c1_i32 : i32
    %1 = arith.addi %0, %arg1 : i32
    %c0_i32 = arith.constant 0 : i32
    %2 = arith.minsi %1, %c0_i32 : i32
    %c0_i32_0 = arith.constant 0 : i32
    return %2, %arg2 : i32, i32
  }
  func.func @transform_1(%arg0: i32, %arg1: i32, %arg2: i32) -> (i32, i32) {
    %c1_i32 = arith.constant 1 : i32
    %0 = arith.muli %arg0, %c1_i32 : i32
    %1 = arith.addi %0, %arg1 : i32
    %c0_i32 = arith.constant 0 : i32
    %2 = arith.minsi %1, %c0_i32 : i32
    %c0_i32_0 = arith.constant 0 : i32
    return %2, %arg2 : i32, i32
  }
  func.func @transform_2(%arg0: i32, %arg1: i32, %arg2: i32) -> (i32, i32) {
    %c1_i32 = arith.constant 1 : i32
    %0 = arith.muli %arg0, %c1_i32 : i32
    %1 = arith.addi %0, %arg1 : i32
    %c0_i32 = arith.constant 0 : i32
    %2 = arith.minsi %1, %c0_i32 : i32
    %c0_i32_0 = arith.constant 0 : i32
    %c0_i32_1 = arith.constant 0 : i32
    return %2, %c0_i32_0 : i32, i32
  }
  func.func @transform_3(%arg0: i32, %arg1: i32, %arg2: i32) -> (i32, i32, i32) {
    %c0_i32 = arith.constant 0 : i32
    %c0_i32_0 = arith.constant 0 : i32
    %c0_i32_1 = arith.constant 0 : i32
    return %arg0, %c0_i32, %c0_i32_0 : i32, i32, i32
  }
}

</mosaic_0001>

<llo_original>
// kernel: tpu_custom_call.1
$region0: #{tpu_custom_call.1}
  #allocation0 [shape = 'u32[]', space=smem, size = 0x4, offset = 0x4, fixed_abs, tag = 'smem constant byte address 0x4 - core index']
  #allocation1 [shape = 'u32[144,128]{1,0:T(1,128)}', space=vmem, size = 0x12000, scoped, tag = 'internal scratch']
  #allocation2 [shape = 'f32[20,1]{1,0:T(8,128)}', space=vmem, size = 0x3000, scoped, tag = 'scratch operand']
  #allocation3 [shape = 'f32[20,1]{1,0:T(8,128)}', space=vmem, size = 0x3000, scoped, tag = 'scratch operand']
  %s0 = inlined_call_operand.hbm [shape: f32[20,200], index: 0, kind: input, shape index: {}]
  %s1 = inlined_call_operand.hbm [shape: f32[20,200], index: 1, kind: input, shape index: {}]
  %s2 = inlined_call_operand.vmem [shape: s32[20,1], index: 2, kind: input, shape index: {}]
  %s3 = inlined_call_operand.hbm [shape: f32[1,1,1], index: 3, kind: output, shape index: {}]
  %s4 = sld [smem:[#allocation0]]
  $region46: #{tpu_custom_call.1} parent=0
    _
  %s6 = ssub.s32 1, %s4
  %s7 = scalar_select 0, %s6, %s4
  $region1: #{tpu_custom_call.1} parent=0
    #allocation4 [shape = 'u8[24576]{0}', space=vmem, size = 0x6000, scoped, tag = 'input window, operand 0, single buffered']
    #allocation5 [shape = 's32[1]{0}', space=sflag, size = 0x4, scoped, tag = 'scoped memory for tpu_custom_call.1']
    #allocation6 [shape = 's32[1]{0}', space=sflag, size = 0x4, scoped, tag = 'scoped memory for tpu_custom_call.1']
    #allocation7 [shape = 'u8[24576]{0}', space=vmem, size = 0x6000, scoped, tag = 'input window, operand 1, single buffered']
    #allocation8 [shape = 's32[1]{0}', space=sflag, size = 0x4, scoped, tag = 'scoped memory for tpu_custom_call.1']
    #allocation9 [shape = 'u8[512]{0}', space=vmem, size = 0x400, scoped, tag = 'output window, operand 0, single buffered']
    %8 = vsyncpa [#allocation5], 0
    %9 = vsyncpa [#allocation8], 0
    %10 = vsyncpa [#allocation6], 0
    // Predicated region
    $region2: #{tpu_custom_call.1} parent=1 // pred_check
      _
    $region3: #{tpu_custom_call.1} parent=1 // pred_check_branch
      %12 = sbr.rel (0) target = $region5
    $region4: #{tpu_custom_call.1} parent=1 // pred_region
      %s13 = sadd.s32 0, 0
      %p14 = scmp.lt.s32.totalorder %s13, 0
      %s15 = scalar_select %p14, %s13, 0
      %s16 = smul.u32 3, %s15
      %s18 = ssub.s32 768, 768
      %19 = vsyncadd [#allocation5], %s18
      %s20 = smul.addr %s16, 2
      %s21 = smul.addr %s20, 128
      %s22 = scalar_lea.hbm %s0, %s21
      %s23 = sshll.u32 [#allocation4], 4
      %s24 = int_to_ptr.vmem [resolvable:$true] %s23
      %29 = dma.hbm_to_vmem [thread:$0]  %s22, 768, %s24, [#allocation5], 256, 256, 16
    $region5: #{tpu_custom_call.1} parent=1 // pred_fallthru
      _
    // Predicated region
    $region6: #{tpu_custom_call.1} parent=1 // pred_check
      _
    $region7: #{tpu_custom_call.1} parent=1 // pred_check_branch
      %31 = sbr.rel (0) target = $region9
    $region8: #{tpu_custom_call.1} parent=1 // pred_region
      %s32 = sadd.s32 0, 0
      %p33 = scmp.lt.s32.totalorder %s32, 0
      %s34 = scalar_select %p33, %s32, 0
      %s35 = smul.u32 3, %s34
      %s37 = ssub.s32 768, 768
      %38 = vsyncadd [#allocation8], %s37
      %s39 = smul.addr %s35, 2
      %s40 = smul.addr %s39, 128
      %s41 = scalar_lea.hbm %s1, %s40
      %s42 = sshll.u32 [#allocation7], 4
      %s43 = int_to_ptr.vmem [resolvable:$true] %s42
      %48 = dma.hbm_to_vmem [thread:$0]  %s41, 768, %s43, [#allocation8], 256, 256, 16
    $region9: #{tpu_custom_call.1} parent=1 // pred_fallthru
      _
    // Predicated region
    $region10: #{tpu_custom_call.1} parent=1 // pred_check
      _
    $region11: #{tpu_custom_call.1} parent=1 // pred_check_branch
      %50 = sbr.rel (0) target = $region13
    $region12: #{tpu_custom_call.1} parent=1 // pred_region
      %s51 = sadd.s32 0, 0
      %p52 = scmp.lt.s32.totalorder %s51, 0
      %s53 = scalar_select %p52, %s51, 0
      %s54 = smul.u32 3, %s53
      %p55 = scmp.lt.s32.totalorder %s54, 2
      %s56 = scalar_select %p55, %s54, 2
      %s57 = smul.addr %s56, 8
      %s58 = scalar_lea.vmem %s2, %s57
      %s59 = sadd.s32 0, 0
      %p60 = scmp.lt.s32.totalorder %s59, 0
      %s61 = scalar_select %p60, %s59, 0
      %s62 = smul.u32 3, %s61
    $region13: #{tpu_custom_call.1} parent=1 // pred_fallthru
      _
    // Predicated region
    $region14: #{tpu_custom_call.1} parent=1 // pred_check
      _
    $region15: #{tpu_custom_call.1} parent=1 // pred_check_branch
      %64 = sbr.rel (0) target = $region17
    $region16: #{tpu_custom_call.1} parent=1 // pred_region
      %65 = dma.done [#allocation5], 768
    $region17: #{tpu_custom_call.1} parent=1 // pred_fallthru
      _
    // Predicated region
    $region18: #{tpu_custom_call.1} parent=1 // pred_check
      _
    $region19: #{tpu_custom_call.1} parent=1 // pred_check_branch
      %67 = sbr.rel (0) target = $region21
    $region20: #{tpu_custom_call.1} parent=1 // pred_region
      %68 = dma.done [#allocation8], 768
    $region21: #{tpu_custom_call.1} parent=1 // pred_fallthru
      _
    %s69 = sadd.s32 0, 0
    %p70 = scmp.lt.s32.totalorder %s69, 0
    %s71 = scalar_select %p70, %s69, 0
    %s72 = smul.u32 3, %s71
    %p73 = scmp.lt.s32.totalorder %s72, 2
    %s74 = scalar_select %p73, %s72, 2
    %s75 = smul.addr %s74, 8
    %s76 = scalar_lea.vmem %s2, %s75
    %s77 = sadd.s32 0, 0
    %p78 = scmp.lt.s32.totalorder %s77, 0
    %s79 = scalar_select %p78, %s77, 0
    %s80 = smul.u32 3, %s79
    %s81 = sadd.s32 0, 0
    %p82 = scmp.lt.s32.totalorder %s81, 0
    %s83 = scalar_select %p82, %s81, 0
    %s84 = smul.u32 3, %s83
    %s85 = sadd.s32 0, 0
    %p86 = scmp.lt.s32.totalorder %s85, 0
    %s87 = scalar_select %p86, %s85, 0
    %s88 = smul.u32 3, %s87
    %p89 = scmp.lt.s32.totalorder %s88, 2
    %s90 = scalar_select %p89, %s88, 2
    %s91 = smul.addr %s90, 8
    %s92 = scalar_lea.vmem %s2, %s91
    %s93 = sadd.s32 0, 0
    %p94 = scmp.lt.s32.totalorder %s93, 0
    %s95 = scalar_select %p94, %s93, 0
    %s96 = smul.u32 3, %s95
    %p97 = scmp.eq.s32.totalorder 0, 0
    %p98 = scmp.eq.s32.totalorder 0, 0
    %p99 = pnand %p97, %p98
    %p100 = pneg %p99
    // Predicated region
    $region22: #{tpu_custom_call.1} parent=1 // pred_check
      _
    $region23: #{tpu_custom_call.1} parent=1 // pred_check_branch
      %102 = sbr.rel (%p99) target = $region25
    $region24: #{tpu_custom_call.1} parent=1 // pred_region
      %vm103 = vcmask 7168
      %104 = vst.msk [vmem:[#allocation3] sm:$0xff] %vm103, 0.0
      %105 = vst.msk [vmem:[#allocation3 + $0x8] sm:$0xff] %vm103, 0.0
      %vm106 = vcmask 3072
      %107 = vst.msk [vmem:[#allocation3 + $0x10] sm:$0xf] %vm106, 0.0
    $region25: #{tpu_custom_call.1} parent=1 // pred_fallthru
      _
    // Predicated region
    $region26: #{tpu_custom_call.1} parent=1 // pred_check
      %p108 = pneg %p98
    $region27: #{tpu_custom_call.1} parent=1 // pred_check_branch
      %110 = sbr.rel (%p108) target = $region29
    $region28: #{tpu_custom_call.1} parent=1 // pred_region
      %vm111 = vcmask 7168
      %112 = vst.msk [vmem:[#allocation2] sm:$0xff] %vm111, 0.0
      %113 = vst.msk [vmem:[#allocation2 + $0x8] sm:$0xff] %vm111, 0.0
      %vm114 = vcmask 3072
      %115 = vst.msk [vmem:[#allocation2 + $0x10] sm:$0xf] %vm114, 0.0
    $region29: #{tpu_custom_call.1} parent=1 // pred_fallthru
      _
    %v116 = vld [vmem:[#allocation4] sm:$0xff]
    %v117 = vld [vmem:[#allocation4 + $0x8] sm:$0xff]
    %v118 = vld [vmem:[#allocation4 + $0x10] sm:$0xff]
    %v119 = vld [vmem:[#allocation4 + $0x18] sm:$0xff]
    %v120 = vld [vmem:[#allocation4 + $0x20] sm:$0xf]
    %v121 = vld [vmem:[#allocation4 + $0x28] sm:$0xf]
    %v122 = vld [vmem:[#allocation7] sm:$0xff]
    %v123 = vld [vmem:[#allocation7 + $0x8] sm:$0xff]
    %v124 = vld [vmem:[#allocation7 + $0x10] sm:$0xff]
    %v125 = vld [vmem:[#allocation7 + $0x18] sm:$0xff]
    %v126 = vld [vmem:[#allocation7 + $0x20] sm:$0xf]
    %v127 = vld [vmem:[#allocation7 + $0x28] sm:$0xf]
    %vm128 = vcmp.ne.f32.partialorder %v122, -1.0
    %vm129 = vcmp.ne.f32.partialorder %v123, -1.0
    %vm130 = vcmp.ne.f32.partialorder %v124, -1.0
    %vm131 = vcmp.ne.f32.partialorder %v125, -1.0
    %vm132 = vcmp.ne.f32.partialorder %v126, -1.0
    %vm133 = vcmp.ne.f32.partialorder %v127, -1.0
    %v134 = vsub.f32 %v116, %v122
    %v135 = vsub.f32 %v117, %v123
    %v136 = vsub.f32 %v118, %v124
    %v137 = vsub.f32 %v119, %v125
    %v138 = vsub.f32 %v120, %v126
    %v139 = vsub.f32 %v121, %v127
    %v140 = vand.u32 2147483647, %v134
    %v141 = vand.u32 2147483647, %v135
    %v142 = vand.u32 2147483647, %v136
    %v143 = vand.u32 2147483647, %v137
    %v144 = vand.u32 2147483647, %v138
    %v145 = vand.u32 2147483647, %v139
    %v146 = vsel %vm128, %v140, 0.0
    %v147 = vsel %vm129, %v141, 0.0
    %v148 = vsel %vm130, %v142, 0.0
    %v149 = vsel %vm131, %v143, 0.0
    %v150 = vsel %vm132, %v144, 0.0
    %v151 = vsel %vm133, %v145, 0.0
    %v152 = vld [vmem:[#allocation2] sm:$0xff]
    %v153 = vld [vmem:[#allocation2 + $0x8] sm:$0xff]
    %v154 = vld [vmem:[#allocation2 + $0x10] sm:$0xf]
    %vm155 = vcmask 588800
    %v156 = vsel %vm155, %v147, 0.0
    %v157 = vadd.f32 %v146, %v156
    %158 = vadd.xlane.f32.xlu0 %v157
    %v159 = vpop.xlane.xlu0 %158
    %v160 = vsel %vm155, %v149, 0.0
    %v161 = vadd.f32 %v148, %v160
    %162 = vadd.xlane.f32.xlu0 %v161
    %v163 = vpop.xlane.xlu0 %162
    %vm164 = vcmask 1043456
    %v165 = vsel %vm164, %v150, 0.0
    %vm166 = vcmask 584704
    %v167 = vsel %vm166, %v151, 0.0
    %v168 = vadd.f32 %v165, %v167
    %169 = vadd.xlane.f32.xlu0 %v168
    %v170 = vpop.xlane.xlu0 %169
    %v171 = vadd.f32 %v152, %v159
    %v172 = vadd.f32 %v153, %v163
    %v173 = vadd.f32 %v154, %v170
    %vm174 = vcmask 7168
    %175 = vst.msk [vmem:[#allocation2] sm:$0xff] %vm174, %v171
    %176 = vst.msk [vmem:[#allocation2 + $0x8] sm:$0xff] %vm174, %v172
    %vm177 = vcmask 3072
    %178 = vst.msk [vmem:[#allocation2 + $0x10] sm:$0xf] %vm177, %v173
    // Predicated region
    $region30: #{tpu_custom_call.1} parent=1 // pred_check
      %p179 = pneg %p98
    $region31: #{tpu_custom_call.1} parent=1 // pred_check_branch
      %181 = sbr.rel (%p179) target = $region33
    $region32: #{tpu_custom_call.1} parent=1 // pred_region
      %v182 = vld [vmem:[%s92] sm:$0xff]
      %v183 = vld [vmem:[%s92 + $0x8] sm:$0xff]
      %v184 = vld [vmem:[%s92 + $0x10] sm:$0xf]
      %v185 = vcvt.s32.f32 %v182
      %v186 = vcvt.s32.f32 %v183
      %v187 = vcvt.s32.f32 %v184
      %s188 = sadd.s32 0, 0
      %s189 = smul.u32 %s188, 20
      %v190 = vlaneseq
      %v191 = vshrl.u32 %v190, 7
      %v192 = vadd.s32 %v191, 8
      %v193 = vadd.s32 %v191, 16
      %v194 = vstv %s189
      %v195 = vadd.s32 %v194, %v191
      %v196 = vadd.s32 %v194, %v192
      %v197 = vadd.s32 %v194, %v193
      %vm198 = vcmp.lt.s32.totalorder %v195, 20
      %vm199 = vcmp.lt.s32.totalorder %v196, 20
      %vm200 = vcmp.lt.s32.totalorder %v197, 20
      %v201 = vld [vmem:[#allocation2] sm:$0xff]
      %v202 = vld [vmem:[#allocation2 + $0x8] sm:$0xff]
      %v203 = vld [vmem:[#allocation2 + $0x10] sm:$0xf]
      %v204 = vrcp.pop %v185
      %v205 = vmul.f32 %v201, %v204
      %v206 = vrcp.pop %v186
      %v207 = vmul.f32 %v202, %v206
      %v208 = vrcp.pop %v187
      %v209 = vmul.f32 %v203, %v208
      %v210 = vsel %vm198, %v205, 0.0
      %v211 = vsel %vm199, %v207, 0.0
      %v212 = vsel %vm200, %v209, 0.0
      %v213 = vld [vmem:[#allocation3] sm:$0xff]
      %v214 = vld [vmem:[#allocation3 + $0x8] sm:$0xff]
      %v215 = vld [vmem:[#allocation3 + $0x10] sm:$0xf]
      %v216 = vadd.f32 %v213, %v210
      %v217 = vadd.f32 %v214, %v211
      %v218 = vadd.f32 %v215, %v212
      %219 = vst.msk [vmem:[#allocation3] sm:$0xff] %vm174, %v216
      %220 = vst.msk [vmem:[#allocation3 + $0x8] sm:$0xff] %vm174, %v217
      %221 = vst.msk [vmem:[#allocation3 + $0x10] sm:$0xf] %vm177, %v218
    $region33: #{tpu_custom_call.1} parent=1 // pred_fallthru
      _
    // Predicated region
    $region34: #{tpu_custom_call.1} parent=1 // pred_check
      _
    $region35: #{tpu_custom_call.1} parent=1 // pred_check_branch
      %223 = sbr.rel (%p99) target = $region37
    $region36: #{tpu_custom_call.1} parent=1 // pred_region
      %v224 = vld [vmem:[#allocation3] sm:$0xff]
      %v225 = vld [vmem:[#allocation3 + $0x8] sm:$0xff]
      %v226 = vld [vmem:[#allocation3 + $0x10] sm:$0xf]
      %v227 = vsel %vm174, %v224, 0.0
      %v228 = vsel %vm174, %v225, 0.0
      %v229 = vadd.f32 %v227, %v228
      %v230 = vsel %vm177, %v226, 0.0
      %v231 = vadd.f32 %v229, %v230
      %v232 = vrot.slane %v231, 4
      %v233 = vadd.f32 %v231, %v232
      %v234 = vrot.slane %v233, 2
      %v235 = vadd.f32 %v233, %v234
      %v236 = vrot.slane %v235, 1
      %v237 = vadd.f32 %v235, %v236
      %vm238 = vcmask 0
      %239 = vst.msk [vmem:[#allocation9] sm:$0x1] %vm238, %v237
    $region37: #{tpu_custom_call.1} parent=1 // pred_fallthru
      _
    // Predicated region
    $region38: #{tpu_custom_call.1} parent=1 // pred_check
      _
    $region39: #{tpu_custom_call.1} parent=1 // pred_check_branch
      %241 = sbr.rel (0) target = $region41
    $region40: #{tpu_custom_call.1} parent=1 // pred_region
      %s243 = ssub.s32 16, 16
      %244 = vsyncadd [#allocation6], %s243
      %s246 = sshll.u32 [#allocation9], 4
      %s247 = int_to_ptr.vmem [resolvable:$true] %s246
      %249 = dma.vmem_to_hbm [thread:$0]  %s247, 16, %s3, [#allocation6]
    $region41: #{tpu_custom_call.1} parent=1 // pred_fallthru
      _
    // Predicated region
    $region42: #{tpu_custom_call.1} parent=1 // pred_check
      _
    $region43: #{tpu_custom_call.1} parent=1 // pred_check_branch
      %251 = sbr.rel (0) target = $region45
    $region44: #{tpu_custom_call.1} parent=1 // pred_region
      %252 = dma.done [#allocation6], 16
    $region45: #{tpu_custom_call.1} parent=1 // pred_fallthru
      _
    %253 = vsyncpa [#allocation5], 1
    %254 = vsyncpa [#allocation8], 1
    %255 = vsyncpa [#allocation6], 1

</llo_original>
